<compile_context>
chip_gen: v6e
topology: v6e:2x2x1
jax: 0.10.0
libtpu: 0.0.40
codegen_flags: <defaults>
</compile_context>

<pallas_src>
import jax
import jax.numpy as jnp
from jax.experimental import pallas as pl
from jax.experimental.pallas import tpu as pltpu


def modulation_kernel(x_ref, w_ref, b_ref, o_ref):
    # x_ref: [F, HW_TILE]      (channels-first, HW on lanes)
    # w_ref: [Cout, F]         (conv weight pre-scaled by this batch's modulation)
    # b_ref: [Cout, 1]
    # o_ref: [Cout, HW_TILE]
    out = jnp.dot(w_ref[...], x_ref[...],
                  preferred_element_type=jnp.float32) + b_ref[...]
    o_ref[...] = out.astype(o_ref.dtype)


def _derive_hw_tile(hw: int, n_feat: int, n_out: int, batch: int,
                    vmem_budget_bytes: int = 40 << 20) -> int:
    """Largest multiple-of-128 HW tile whose double-buffered x/out blocks plus
    ~2 Cout x tile f32 matmul temporaries fit the VMEM budget (conservative for
    v7x's 64 MiB physical VMEM). Keeps >= 2 grid steps when batch == 1 so both
    v7x TensorCores get work."""
    hw_pad128 = ((hw + 127) // 128) * 128
    # Per lane-column (f32, conservative): 2x x block + 2x out block + ~2 temps.
    bytes_per_col = 4 * (2 * n_feat + 2 * n_out + 2 * n_out)
    tile = (vmem_budget_bytes // bytes_per_col // 128) * 128
    tile = max(128, min(tile, hw_pad128))
    if batch == 1 and hw_pad128 >= 256 and tile >= hw_pad128:
        tile = max(128, ((hw_pad128 // 2 + 127) // 128) * 128)
    return tile


def modulation_forward(x_nchw, cond, lin_w, lin_b, conv_w, conv_b,
                       hw_tile=None, out_dtype=None,
                       vmem_budget_bytes=40 << 20):
    """x_nchw: [B, F, H, W]; cond: [B, C]; lin_w: [F, C]; lin_b: [F];
    conv_w: [Cout, F, 1, 1]; conv_b: [Cout]. Returns [B, Cout, H, W]."""
    B, F, H, W = x_nchw.shape
    Cout = conv_w.shape[0]
    HW = H * W
    out_dtype = x_nchw.dtype if out_dtype is None else out_dtype

    # --- Hoisted modulation (depends only on b, not on HW tiles) ------------
    m = jnp.dot(cond, lin_w.T, preferred_element_type=jnp.float32) + lin_b   # [B, F]
    wc_scaled = (conv_w.reshape(Cout, F)[None, :, :]
                 * m[:, None, :]).astype(x_nchw.dtype)                       # [B, Cout, F]
    bc = conv_b.reshape(Cout, 1).astype(jnp.float32)                         # [Cout, 1]

    # --- Tile selection & padding (lane-dense stores, bounded VMEM) ---------
    if hw_tile is None:
        hw_tile = _derive_hw_tile(HW, F, Cout, B, vmem_budget_bytes)
    assert hw_tile % 128 == 0, hw_tile
    n_hw = (HW + hw_tile - 1) // hw_tile
    HW_pad = n_hw * hw_tile

    x_k = x_nchw.reshape(B, F, HW)                                           # pure reshape
    if HW_pad != HW:
        x_k = jnp.pad(x_k, ((0, 0), (0, 0), (0, HW_pad - HW)))

    # --- VMEM accounting -> explicit limit (portable across v5e/v6e/v7x) ----
    itemsize_x = jnp.dtype(x_k.dtype).itemsize
    itemsize_o = jnp.dtype(out_dtype).itemsize
    vmem_need = (hw_tile * (2 * F * itemsize_x + 2 * Cout * itemsize_o + 2 * Cout * 4)
                 + 2 * Cout * F * itemsize_x + 2 * Cout * 4)
    vmem_limit = int(min(max(vmem_need + (4 << 20), 32 << 20), 56 << 20))

    cost = pl.CostEstimate(
        flops=2 * B * HW_pad * F * Cout,
        transcendentals=0,
        bytes_accessed=(B * F * HW_pad * itemsize_x
                        + B * Cout * HW_pad * itemsize_o
                        + B * Cout * F * itemsize_x + Cout * 4),
    )

    out_k = pl.pallas_call(
        modulation_kernel,
        out_shape=jax.ShapeDtypeStruct((B, Cout, HW_pad), out_dtype),
        grid_spec=pltpu.PrefetchScalarGridSpec(
            num_scalar_prefetch=0,
            grid=(B, n_hw),
            in_specs=[
                pl.BlockSpec((pl.Squeezed(), F, hw_tile),
                             lambda b, t: (b, 0, t)),                 # x
                pl.BlockSpec((pl.Squeezed(), Cout, F),
                             lambda b, t: (b, 0, 0)),                 # folded conv W
                pl.BlockSpec((Cout, 1), lambda b, t: (0, 0)),         # conv bias
            ],
            out_specs=pl.BlockSpec((pl.Squeezed(), Cout, hw_tile),
                                   lambda b, t: (b, 0, t)),
        ),
        compiler_params=pltpu.CompilerParams(
            dimension_semantics=("parallel", "parallel"),
            vmem_limit_bytes=vmem_limit),
        cost_estimate=cost,
    )(x_k, wc_scaled, bc)

    if HW_pad != HW:
        out_k = out_k[:, :, :HW]
    return out_k.reshape(B, Cout, H, W)


def reference_forward(x_nchw, cond, lin_w, lin_b, conv_w, conv_b):
    """Pure-JAX reference mirroring the PyTorch forward."""
    m = cond @ lin_w.T + lin_b                         # [B, F]
    xm = x_nchw * m[:, :, None, None]                  # [B, F, H, W]
    y = jnp.einsum("bfhw,of->bohw", xm, conv_w.reshape(conv_w.shape[0], -1))
    return y + conv_b[None, :, None, None]


if __name__ == "__main__":
    key = jax.random.PRNGKey(0)
    B, F, H, W = 2, 8, 16, 16     # num_features = 8
    C = 16                        # num_cond_features = 16
    Cout = 256                    # compressed=True -> Conv2d(F, 256, kernel_size=1)

    ks = jax.random.split(key, 6)
    x = jax.random.normal(ks[0], (B, F, H, W), dtype=jnp.float32)
    cond = jax.random.normal(ks[1], (B, C), dtype=jnp.float32)

    # Deterministic parameter init (uniform ranges mimic PyTorch defaults).
    lin_w = jax.random.uniform(ks[2], (F, C), minval=-(C ** -0.5), maxval=C ** -0.5)
    lin_b = jax.random.uniform(ks[3], (F,), minval=-(C ** -0.5), maxval=C ** -0.5)
    conv_w = jax.random.uniform(ks[4], (Cout, F, 1, 1), minval=-(F ** -0.5), maxval=F ** -0.5)
    conv_b = jax.random.uniform(ks[5], (Cout,), minval=-(F ** -0.5), maxval=F ** -0.5)

    ref = reference_forward(x, cond, lin_w, lin_b, conv_w, conv_b)

    # Auto-derived tile (single block at this small HW) and forced 128-tiling
    # (grid=(B, 2)) exercise both the resident-weight and pipelined paths.
    out_auto = jax.block_until_ready(
        modulation_forward(x, cond, lin_w, lin_b, conv_w, conv_b))
    out_128 = jax.block_until_ready(
        modulation_forward(x, cond, lin_w, lin_b, conv_w, conv_b, hw_tile=128))
    for out in (out_auto, out_128):
        assert out.shape == (B, Cout, H, W), out.shape
        assert jnp.allclose(out, ref, atol=1e-4, rtol=1e-4), \
            float(jnp.max(jnp.abs(out - ref)))

    # Non-128-aligned spatial extent exercises the pad-and-slice path.
    B2, H2, W2 = 1, 10, 10
    x2 = jax.random.normal(ks[0], (B2, F, H2, W2), dtype=jnp.float32)
    cond2 = jax.random.normal(ks[1], (B2, C), dtype=jnp.float32)
    ref2 = reference_forward(x2, cond2, lin_w, lin_b, conv_w, conv_b)
    out2 = jax.block_until_ready(
        modulation_forward(x2, cond2, lin_w, lin_b, conv_w, conv_b))
    assert out2.shape == (B2, Cout, H2, W2), out2.shape
    assert jnp.allclose(out2, ref2, atol=1e-4, rtol=1e-4), \
        float(jnp.max(jnp.abs(out2 - ref2)))

    print("KERNEL_OK")
</pallas_src>

<mosaic_0001>
module attributes {stable_mosaic.version = 11 : i64} {
  func.func @modulation_kernel(%arg0: i32, %arg1: i32, %arg2: memref<1x8x256xf32, #tpu.memory_space<vmem>>, %arg3: memref<1x256x8xf32, #tpu.memory_space<vmem>>, %arg4: memref<256x1xf32, #tpu.memory_space<vmem>>, %arg5: memref<1x256x256xf32, #tpu.memory_space<vmem>>) attributes {dimension_semantics = [#tpu.dimension_semantics<parallel>, #tpu.dimension_semantics<parallel>], iteration_bounds = array<i64: 2, 1>, scalar_prefetch = 0 : i64, scratch_operands = 0 : i64, tpu.core_type = #tpu.core_type<tc>, window_params = [{transform_indices = @transform_0, window_bounds = array<i64: 1, 8, 256>}, {transform_indices = @transform_1, window_bounds = array<i64: 1, 256, 8>}, {pipeline_mode = #tpu.pipeline_mode<synchronous>, transform_indices = @transform_2, window_bounds = array<i64: 256, 1>}, {transform_indices = @transform_3, window_bounds = array<i64: 1, 256, 256>}]} {
    %c0 = arith.constant 0 : index
    %c0_0 = arith.constant 0 : index
    %c0_1 = arith.constant 0 : index
    %0 = vector.load %arg3[%c0, %c0_0, %c0_1] : memref<1x256x8xf32, #tpu.memory_space<vmem>>, vector<1x256x8xf32>
    %1 = vector.shape_cast %0 : vector<1x256x8xf32> to vector<256x8xf32>
    %c0_2 = arith.constant 0 : index
    %c0_3 = arith.constant 0 : index
    %c0_4 = arith.constant 0 : index
    %2 = vector.load %arg2[%c0_2, %c0_3, %c0_4] : memref<1x8x256xf32, #tpu.memory_space<vmem>>, vector<1x8x256xf32>
    %3 = vector.shape_cast %2 : vector<1x8x256xf32> to vector<8x256xf32>
    %cst = arith.constant dense<0.000000e+00> : vector<256x256xf32>
    %4 = tpu.matmul %1, %3, %cst {dimension_numbers = #tpu.dot_dimension_numbers<[1], [0], [0], [1], [0, 0, 1, 1], [], []>} : vector<256x8xf32>, vector<8x256xf32>, vector<256x256xf32> -> vector<256x256xf32>
    %c0_5 = arith.constant 0 : index
    %c0_6 = arith.constant 0 : index
    %5 = vector.load %arg4[%c0_5, %c0_6] : memref<256x1xf32, #tpu.memory_space<vmem>>, vector<256x1xf32>
    %6 = vector.broadcast %5 : vector<256x1xf32> to vector<256x256xf32>
    %7 = arith.addf %4, %6 : vector<256x256xf32>
    %c0_7 = arith.constant 0 : index
    %c0_8 = arith.constant 0 : index
    %c0_9 = arith.constant 0 : index
    %8 = vector.load %arg5[%c0_7, %c0_8, %c0_9] : memref<1x256x256xf32, #tpu.memory_space<vmem>>, vector<1x256x256xf32>
    %9 = vector.shape_cast %8 : vector<1x256x256xf32> to vector<256x256xf32>
    %10 = vector.shape_cast %7 : vector<256x256xf32> to vector<1x256x256xf32>
    tpu.vector_store %arg5[%c0_7, %c0_8, %c0_9], %10 {strides = array<i32>} : memref<1x256x256xf32, #tpu.memory_space<vmem>>, vector<1x256x256xf32>,
    return
  }
  func.func @transform_0(%arg0: i32, %arg1: i32) -> (i32, i32, i32) {
    %c0_i32 = arith.constant 0 : i32
    %c0_i32_0 = arith.constant 0 : i32
    return %arg0, %c0_i32, %arg1 : i32, i32, i32
  }
  func.func @transform_1(%arg0: i32, %arg1: i32) -> (i32, i32, i32) {
    %c0_i32 = arith.constant 0 : i32
    %c0_i32_0 = arith.constant 0 : i32
    %c0_i32_1 = arith.constant 0 : i32
    return %arg0, %c0_i32, %c0_i32_0 : i32, i32, i32
  }
  func.func @transform_2(%arg0: i32, %arg1: i32) -> (i32, i32) {
    %c0_i32 = arith.constant 0 : i32
    %c0_i32_0 = arith.constant 0 : i32
    %c0_i32_1 = arith.constant 0 : i32
    return %c0_i32, %c0_i32_0 : i32, i32
  }
  func.func @transform_3(%arg0: i32, %arg1: i32) -> (i32, i32, i32) {
    %c0_i32 = arith.constant 0 : i32
    %c0_i32_0 = arith.constant 0 : i32
    return %arg0, %c0_i32, %arg1 : i32, i32, i32
  }
}

</mosaic_0001>

<llo_original>
// kernel: tpu_custom_call.1
$region0: #{tpu_custom_call.1}
  #allocation0 [shape = 'u32[]', space=smem, size = 0x4, offset = 0x4, fixed_abs, tag = 'smem constant byte address 0x4 - core index']
  #allocation1 [shape = 'u32[144,128]{1,0:T(1,128)}', space=vmem, size = 0x12000, scoped, tag = 'internal scratch']
  %s0 = inlined_call_operand.vmem [shape: f32[2,8,256], index: 0, kind: input, shape index: {}]
  %s1 = inlined_call_operand.vmem [shape: f32[2,256,8], index: 1, kind: input, shape index: {}]
  %s2 = inlined_call_operand.vmem [shape: f32[256,1], index: 2, kind: input, shape index: {}]
  %s3 = inlined_call_operand.hbm [shape: f32[2,256,256], index: 3, kind: output, shape index: {}]
  %s4 = sld [smem:[#allocation0]]
  $region45: #{tpu_custom_call.1} parent=0
    _
  %s6 = ssub.s32 1, %s4
  %s7 = scalar_select 0, %s6, %s4
  $region1: #{tpu_custom_call.1} parent=0
    #allocation2 [shape = 'u8[524288]{0}', space=vmem, size = 0x80000, scoped, tag = 'output window, operand 0']
    #allocation3 [shape = 's32[2]{0}', space=sflag, size = 0x8, scoped, tag = 'scoped memory for tpu_custom_call.1']
    %8 = vsyncpa [#allocation3], 0
    %s9 = scalar_lea.sflag [#allocation3], 1
    %10 = vsyncpa %s9, 0
    loop: start=0, step=1, limit=4
    $region2: #{tpu_custom_call.1} parent=1 // loop_pre_header
      _
    $region3: #{tpu_custom_call.1} parent=1 // loop_header
      %s12 = sphi 0, %s16
      %p13 = scmp.ge.s32.totalorder %s12, 4
      %s19 = sphi 0, %s31
      %s20 = sphi 0, %s27
      %s21 = sphi 0, %s19
      %s22 = sphi 0, %s20
      %s23 = sphi 0, %s21
      %s24 = sphi 0, %s22
      %s36 = sphi 0, %s38
      %s39 = sphi 0, %s36
      %s40 = sphi 0, %s39
      %s56 = sphi 0, %s40
      %s62 = sphi 0, %s64
      %s65 = sphi 0, %s62
      %s66 = sphi 0, %s65
      %s82 = sphi 0, %s66
      %s86 = sphi 0, %s86
      %s88 = sphi 0, %s86
      %s89 = sphi 0, %s88
      %s103 = sphi 0, %s89
      %s111 = sphi 0, %s113
      %s114 = sphi 0, %s111
      %s115 = sphi 0, %s114
      %s131 = sphi 0, %s115
    $region4: #{tpu_custom_call.1} parent=1 // loop_header_branch
      %15 = sbr.rel (%p13) target = $region8
    $region5: #{tpu_custom_call.1} parent=1 // loop_body
      %s17 = ssub.s32 %s12, 1
      %s18 = ssub.s32 %s12, 2
      %s25 = sadd.s32 1, %s20
      %p26 = scmp.ge.s32.totalorder %s25, 1
      %s27 = scalar_select %p26, 0, %s25
      %s28 = sadd.s32 1, %s19
      %s29 = scalar_select %p26, %s28, %s19
      %p30 = scmp.ge.s32.totalorder %s29, 2
      %s31 = scalar_select %p30, 0, %s29
      %s32 = ssub.s32 %s19, %s31
      %s33 = ssub.s32 %s20, %s27
      %s34 = sor.u32 %s32, %s33
      %p35 = scmp.eq.s32.totalorder %s34, 0
      %s37 = sadd.s32 %s36, 1
      %s38 = scalar_select %p35, %s36, %s37
      %p41 = pneg %p35
      %p42 = scmp.eq.s32.totalorder %s12, 1
      %p43 = por %p41, %p42
      %p44 = scmp.ne.s32.totalorder %s36, %s39
      %p45 = scmp.eq.s32.totalorder %s12, 0
      %p46 = por %p44, %p45
      %p47 = scmp.ne.s32.totalorder %s36, %s39
      %p48 = scmp.eq.s32.totalorder %s17, 1
      %p49 = por %p47, %p48
      %p50 = scmp.ne.s32.totalorder %s39, %s40
      %p51 = scmp.eq.s32.totalorder %s17, 0
      %p52 = por %p50, %p51
      %p53 = scmp.ne.s32.totalorder %s39, %s40
      %p54 = scmp.eq.s32.totalorder %s18, 1
      %p55 = por %p53, %p54
      %p57 = scmp.ne.s32.totalorder %s40, %s56
      %p58 = scmp.eq.s32.totalorder %s18, 0
      %p59 = por %p57, %p58
      %s60 = ssub.s32 %s19, %s31
      %p61 = scmp.eq.s32.totalorder %s60, 0
      %s63 = sadd.s32 %s62, 1
      %s64 = scalar_select %p61, %s62, %s63
      %p67 = pneg %p61
      %p68 = scmp.eq.s32.totalorder %s12, 1
      %p69 = por %p67, %p68
      %p70 = scmp.ne.s32.totalorder %s62, %s65
      %p71 = scmp.eq.s32.totalorder %s12, 0
      %p72 = por %p70, %p71
      %p73 = scmp.ne.s32.totalorder %s62, %s65
      %p74 = scmp.eq.s32.totalorder %s17, 1
      %p75 = por %p73, %p74
      %p76 = scmp.ne.s32.totalorder %s65, %s66
      %p77 = scmp.eq.s32.totalorder %s17, 0
      %p78 = por %p76, %p77
      %p79 = scmp.ne.s32.totalorder %s65, %s66
      %p80 = scmp.eq.s32.totalorder %s18, 1
      %p81 = por %p79, %p80
      %p83 = scmp.ne.s32.totalorder %s66, %s82
      %p84 = scmp.eq.s32.totalorder %s18, 0
      %p85 = por %p83, %p84
      %s87 = sadd.s32 %s86, 1
      %p90 = scmp.eq.s32.totalorder %s12, 1
      %p91 = scmp.ne.s32.totalorder %s86, %s88
      %p92 = scmp.eq.s32.totalorder %s12, 0
      %p93 = por %p91, %p92
      %p94 = scmp.ne.s32.totalorder %s86, %s88
      %p95 = scmp.eq.s32.totalorder %s17, 1
      %p96 = por %p94, %p95
      %p97 = scmp.ne.s32.totalorder %s88, %s89
      %p98 = scmp.eq.s32.totalorder %s17, 0
      %p99 = por %p97, %p98
      %p100 = scmp.ne.s32.totalorder %s88, %s89
      %p101 = scmp.eq.s32.totalorder %s18, 1
      %p102 = por %p100, %p101
      %p104 = scmp.ne.s32.totalorder %s89, %s103
      %p105 = scmp.eq.s32.totalorder %s18, 0
      %p106 = por %p104, %p105
      %s107 = ssub.s32 %s19, %s31
      %s108 = ssub.s32 %s20, %s27
      %s109 = sor.u32 %s107, %s108
      %p110 = scmp.eq.s32.totalorder %s109, 0
      %s112 = sadd.s32 %s111, 1
      %s113 = scalar_select %p110, %s111, %s112
      %p116 = pneg %p110
      %p117 = scmp.eq.s32.totalorder %s12, 1
      %p118 = por %p116, %p117
      %p119 = scmp.ne.s32.totalorder %s111, %s114
      %p120 = scmp.eq.s32.totalorder %s12, 0
      %p121 = por %p119, %p120
      %p122 = scmp.ne.s32.totalorder %s111, %s114
      %p123 = scmp.eq.s32.totalorder %s17, 1
      %p124 = por %p122, %p123
      %p125 = scmp.ne.s32.totalorder %s114, %s115
      %p126 = scmp.eq.s32.totalorder %s17, 0
      %p127 = por %p125, %p126
      %p128 = scmp.ne.s32.totalorder %s114, %s115
      %p129 = scmp.eq.s32.totalorder %s18, 1
      %p130 = por %p128, %p129
      %p132 = scmp.ne.s32.totalorder %s115, %s131
      %p133 = scmp.eq.s32.totalorder %s18, 0
      %p134 = por %p132, %p133
      %p135 = scmp.le.s32.totalorder 1, %s12
      %p136 = scmp.lt.s32.totalorder %s12, 3
      %p137 = pnand %p135, %p136
      %p138 = pneg %p137
      // Predicated region
      $region9: #{tpu_custom_call.1} parent=5 // pred_check
        _
      $region10: #{tpu_custom_call.1} parent=5 // pred_check_branch
        %140 = sbr.rel (%p137) target = $region12
      $region11: #{tpu_custom_call.1} parent=5 // pred_region
        %s141 = ssub.s32 %s12, 1
        // Predicated region
        $region13: #{tpu_custom_call.1} parent=11 // pred_check
          %p142 = pneg %p99
        $region14: #{tpu_custom_call.1} parent=11 // pred_check_branch
          %144 = sbr.rel (%p142) target = $region16
        $region15: #{tpu_custom_call.1} parent=11 // pred_region
          _
        $region16: #{tpu_custom_call.1} parent=11 // pred_fallthru
          _
      $region12: #{tpu_custom_call.1} parent=5 // pred_fallthru
        _
      %p145 = scmp.lt.s32.totalorder %s12, 2
      // Predicated region
      $region17: #{tpu_custom_call.1} parent=5 // pred_check
        %p146 = pneg %p145
      $region18: #{tpu_custom_call.1} parent=5 // pred_check_branch
        %148 = sbr.rel (%p146) target = $region20
      $region19: #{tpu_custom_call.1} parent=5 // pred_region
        // Predicated region
        $region21: #{tpu_custom_call.1} parent=19 // pred_check
          %p149 = pneg %p46
        $region22: #{tpu_custom_call.1} parent=19 // pred_check_branch
          %151 = sbr.rel (%p149) target = $region24
        $region23: #{tpu_custom_call.1} parent=19 // pred_region
          %s152 = smul.u32 2, %s20
          %p153 = scmp.lt.s32.totalorder %s19, 1
          %s154 = scalar_select %p153, %s19, 1
          %p155 = scmp.lt.s32.totalorder %s152, 1
          %s156 = scalar_select %p155, %s152, 1
          %s157 = smul.addr %s154, 2
          %s158 = sadd.s32 %s156, %s157
          %s159 = smul.addr %s158, 8
          %s160 = scalar_lea.vmem %s0, %s159
          %s161 = smul.u32 2, %s20
        $region24: #{tpu_custom_call.1} parent=19 // pred_fallthru
          _
        // Predicated region
        $region25: #{tpu_custom_call.1} parent=19 // pred_check
          %p162 = pneg %p72
        $region26: #{tpu_custom_call.1} parent=19 // pred_check_branch
          %164 = sbr.rel (%p162) target = $region28
        $region27: #{tpu_custom_call.1} parent=19 // pred_region
          %p165 = scmp.lt.s32.totalorder %s19, 1
          %s166 = scalar_select %p165, %s19, 1
          %s167 = smul.addr %s166, 32
          %s168 = smul.addr %s167, 8
          %s169 = scalar_lea.vmem %s1, %s168
        $region28: #{tpu_custom_call.1} parent=19 // pred_fallthru
          _
      $region20: #{tpu_custom_call.1} parent=5 // pred_fallthru
        _
      %p170 = scmp.le.s32.totalorder 1, %s12
      %p171 = scmp.lt.s32.totalorder %s12, 3
      %p172 = pnand %p170, %p171
      %p173 = pneg %p172
      // Predicated region
      $region29: #{tpu_custom_call.1} parent=5 // pred_check
        _
      $region30: #{tpu_custom_call.1} parent=5 // pred_check_branch
        %175 = sbr.rel (%p172) target = $region32
      $region31: #{tpu_custom_call.1} parent=5 // pred_region
        %s176 = ssub.s32 %s12, 1
        %s177 = smul.u32 2, %s22
        %p178 = scmp.lt.s32.totalorder %s21, 1
        %s179 = scalar_select %p178, %s21, 1
        %p180 = scmp.lt.s32.totalorder %s177, 1
        %s181 = scalar_select %p180, %s177, 1
        %s182 = smul.addr %s179, 2
        %s183 = sadd.s32 %s181, %s182
        %s184 = smul.addr %s183, 8
        %s185 = scalar_lea.vmem %s0, %s184
        %p186 = pneg %p52
        %p187 = pneg %p49
        %p188 = scmp.lt.s32.totalorder %s21, 1
        %s189 = scalar_select %p188, %s21, 1
        %s190 = smul.addr %s189, 32
        %s191 = smul.addr %s190, 8
        %s192 = scalar_lea.vmem %s1, %s191
        %p193 = pneg %p78
        %p194 = pneg %p75
        %p195 = pneg %p99
        %p196 = pneg %p96
        %p197 = pneg %p127
        %p198 = pneg %p124
        %s199 = sand.u32 %s114, 1
        %s200 = scalar_lea.sflag [#allocation3], %s199
        %s201 = sand.u32 %s114, 1
        %s202 = smul.addr %s201, 512
        %s203 = scalar_lea.vmem [#allocation2], %s202
        %s204 = smul.u32 2, %s22
        %p205 = scmp.lt.s32.totalorder %s21, 1
        %s206 = scalar_select %p205, %s21, 1
        %p207 = scmp.lt.s32.totalorder %s204, 1
        %s208 = scalar_select %p207, %s204, 1
        %s209 = smul.addr %s206, 2
        %s210 = sadd.s32 %s208, %s209
        %s211 = smul.addr %s210, 8
        %s212 = scalar_lea.vmem %s0, %s211
        %s213 = smul.u32 2, %s22
        %p214 = scmp.lt.s32.totalorder %s21, 1
        %s215 = scalar_select %p214, %s21, 1
        %s216 = smul.addr %s215, 32
        %s217 = smul.addr %s216, 8
        %s218 = scalar_lea.vmem %s1, %s217
        %s219 = smul.u32 2, %s22
        %v220 = vld [vmem:[%s218] sm:$0xff]
        %v221 = vld [vmem:[%s218 + $0x8] sm:$0xff]
        %v222 = vld [vmem:[%s218 + $0x10] sm:$0xff]
        %v223 = vld [vmem:[%s218 + $0x18] sm:$0xff]
        %v224 = vld [vmem:[%s218 + $0x20] sm:$0xff]
        %v225 = vld [vmem:[%s218 + $0x28] sm:$0xff]
        %v226 = vld [vmem:[%s218 + $0x30] sm:$0xff]
        %v227 = vld [vmem:[%s218 + $0x38] sm:$0xff]
        %v228 = vld [vmem:[%s218 + $0x40] sm:$0xff]
        %v229 = vld [vmem:[%s218 + $0x48] sm:$0xff]
        %v230 = vld [vmem:[%s218 + $0x50] sm:$0xff]
        %v231 = vld [vmem:[%s218 + $0x58] sm:$0xff]
        %v232 = vld [vmem:[%s218 + $0x60] sm:$0xff]
        %v233 = vld [vmem:[%s218 + $0x68] sm:$0xff]
        %v234 = vld [vmem:[%s218 + $0x70] sm:$0xff]
        %v235 = vld [vmem:[%s218 + $0x78] sm:$0xff]
        %v236 = vld [vmem:[%s218 + $0x80] sm:$0xff]
        %v237 = vld [vmem:[%s218 + $0x88] sm:$0xff]
        %v238 = vld [vmem:[%s218 + $0x90] sm:$0xff]
        %v239 = vld [vmem:[%s218 + $0x98] sm:$0xff]
        %v240 = vld [vmem:[%s218 + $0xa0] sm:$0xff]
        %v241 = vld [vmem:[%s218 + $0xa8] sm:$0xff]
        %v242 = vld [vmem:[%s218 + $0xb0] sm:$0xff]
        %v243 = vld [vmem:[%s218 + $0xb8] sm:$0xff]
        %v244 = vld [vmem:[%s218 + $0xc0] sm:$0xff]
        %v245 = vld [vmem:[%s218 + $0xc8] sm:$0xff]
        %v246 = vld [vmem:[%s218 + $0xd0] sm:$0xff]
        %v247 = vld [vmem:[%s218 + $0xd8] sm:$0xff]
        %v248 = vld [vmem:[%s218 + $0xe0] sm:$0xff]
        %v249 = vld [vmem:[%s218 + $0xe8] sm:$0xff]
        %v250 = vld [vmem:[%s218 + $0xf0] sm:$0xff]
        %v251 = vld [vmem:[%s218 + $0xf8] sm:$0xff]
        %v252 = vld [vmem:[%s212] sm:$0xff]
        %v253 = vld [vmem:[%s212 + $0x8] sm:$0xff]
        %v254 = vld [vmem:[%s2] sm:$0xff]
        %v255 = vld [vmem:[%s2 + $0x8] sm:$0xff]
        %v256 = vld [vmem:[%s2 + $0x10] sm:$0xff]
        %v257 = vld [vmem:[%s2 + $0x18] sm:$0xff]
        %v258 = vld [vmem:[%s2 + $0x20] sm:$0xff]
        %v259 = vld [vmem:[%s2 + $0x28] sm:$0xff]
        %v260 = vld [vmem:[%s2 + $0x30] sm:$0xff]
        %v261 = vld [vmem:[%s2 + $0x38] sm:$0xff]
        %v262 = vld [vmem:[%s2 + $0x40] sm:$0xff]
        %v263 = vld [vmem:[%s2 + $0x48] sm:$0xff]
        %v264 = vld [vmem:[%s2 + $0x50] sm:$0xff]
        %v265 = vld [vmem:[%s2 + $0x58] sm:$0xff]
        %v266 = vld [vmem:[%s2 + $0x60] sm:$0xff]
        %v267 = vld [vmem:[%s2 + $0x68] sm:$0xff]
        %v268 = vld [vmem:[%s2 + $0x70] sm:$0xff]
        %v269 = vld [vmem:[%s2 + $0x78] sm:$0xff]
        %v270 = vld [vmem:[%s2 + $0x80] sm:$0xff]
        %v271 = vld [vmem:[%s2 + $0x88] sm:$0xff]
        %v272 = vld [vmem:[%s2 + $0x90] sm:$0xff]
        %v273 = vld [vmem:[%s2 + $0x98] sm:$0xff]
        %v274 = vld [vmem:[%s2 + $0xa0] sm:$0xff]
        %v275 = vld [vmem:[%s2 + $0xa8] sm:$0xff]
        %v276 = vld [vmem:[%s2 + $0xb0] sm:$0xff]
        %v277 = vld [vmem:[%s2 + $0xb8] sm:$0xff]
        %v278 = vld [vmem:[%s2 + $0xc0] sm:$0xff]
        %v279 = vld [vmem:[%s2 + $0xc8] sm:$0xff]
        %v280 = vld [vmem:[%s2 + $0xd0] sm:$0xff]
        %v281 = vld [vmem:[%s2 + $0xd8] sm:$0xff]
        %v282 = vld [vmem:[%s2 + $0xe0] sm:$0xff]
        %v283 = vld [vmem:[%s2 + $0xe8] sm:$0xff]
        %v284 = vld [vmem:[%s2 + $0xf0] sm:$0xff]
        %v285 = vld [vmem:[%s2 + $0xf8] sm:$0xff]
        %287 = vset.pattern.permute.xlu0 0
        %288 = vperm.xlu0 %287, %v254
        %v289 = vpop.permute.xlu0 %288
        %292 = vset.pattern.permute.xlu0 0
        %293 = vperm.xlu0 %292, %v255
        %v294 = vpop.permute.xlu0 %293
        %297 = vset.pattern.permute.xlu0 0
        %298 = vperm.xlu0 %297, %v256
        %v299 = vpop.permute.xlu0 %298
        %302 = vset.pattern.permute.xlu0 0
        %303 = vperm.xlu0 %302, %v257
        %v304 = vpop.permute.xlu0 %303
        %307 = vset.pattern.permute.xlu0 0
        %308 = vperm.xlu0 %307, %v258
        %v309 = vpop.permute.xlu0 %308
        %312 = vset.pattern.permute.xlu0 0
        %313 = vperm.xlu0 %312, %v259
        %v314 = vpop.permute.xlu0 %313
        %317 = vset.pattern.permute.xlu0 0
        %318 = vperm.xlu0 %317, %v260
        %v319 = vpop.permute.xlu0 %318
        %322 = vset.pattern.permute.xlu0 0
        %323 = vperm.xlu0 %322, %v261
        %v324 = vpop.permute.xlu0 %323
        %327 = vset.pattern.permute.xlu0 0
        %328 = vperm.xlu0 %327, %v262
        %v329 = vpop.permute.xlu0 %328
        %332 = vset.pattern.permute.xlu0 0
        %333 = vperm.xlu0 %332, %v263
        %v334 = vpop.permute.xlu0 %333
        %337 = vset.pattern.permute.xlu0 0
        %338 = vperm.xlu0 %337, %v264
        %v339 = vpop.permute.xlu0 %338
        %342 = vset.pattern.permute.xlu0 0
        %343 = vperm.xlu0 %342, %v265
        %v344 = vpop.permute.xlu0 %343
        %347 = vset.pattern.permute.xlu0 0
        %348 = vperm.xlu0 %347, %v266
        %v349 = vpop.permute.xlu0 %348
        %352 = vset.pattern.permute.xlu0 0
        %353 = vperm.xlu0 %352, %v267
        %v354 = vpop.permute.xlu0 %353
        %357 = vset.pattern.permute.xlu0 0
        %358 = vperm.xlu0 %357, %v268
        %v359 = vpop.permute.xlu0 %358
        %362 = vset.pattern.permute.xlu0 0
        %363 = vperm.xlu0 %362, %v269
        %v364 = vpop.permute.xlu0 %363
        %367 = vset.pattern.permute.xlu0 0
        %368 = vperm.xlu0 %367, %v270
        %v369 = vpop.permute.xlu0 %368
        %372 = vset.pattern.permute.xlu0 0
        %373 = vperm.xlu0 %372, %v271
        %v374 = vpop.permute.xlu0 %373
        %377 = vset.pattern.permute.xlu0 0
        %378 = vperm.xlu0 %377, %v272
        %v379 = vpop.permute.xlu0 %378
        %382 = vset.pattern.permute.xlu0 0
        %383 = vperm.xlu0 %382, %v273
        %v384 = vpop.permute.xlu0 %383
        %387 = vset.pattern.permute.xlu0 0
        %388 = vperm.xlu0 %387, %v274
        %v389 = vpop.permute.xlu0 %388
        %392 = vset.pattern.permute.xlu0 0
        %393 = vperm.xlu0 %392, %v275
        %v394 = vpop.permute.xlu0 %393
        %397 = vset.pattern.permute.xlu0 0
        %398 = vperm.xlu0 %397, %v276
        %v399 = vpop.permute.xlu0 %398
        %402 = vset.pattern.permute.xlu0 0
        %403 = vperm.xlu0 %402, %v277
        %v404 = vpop.permute.xlu0 %403
        %407 = vset.pattern.permute.xlu0 0
        %408 = vperm.xlu0 %407, %v278
        %v409 = vpop.permute.xlu0 %408
        %412 = vset.pattern.permute.xlu0 0
        %413 = vperm.xlu0 %412, %v279
        %v414 = vpop.permute.xlu0 %413
        %417 = vset.pattern.permute.xlu0 0
        %418 = vperm.xlu0 %417, %v280
        %v419 = vpop.permute.xlu0 %418
        %422 = vset.pattern.permute.xlu0 0
        %423 = vperm.xlu0 %422, %v281
        %v424 = vpop.permute.xlu0 %423
        %427 = vset.pattern.permute.xlu0 0
        %428 = vperm.xlu0 %427, %v282
        %v429 = vpop.permute.xlu0 %428
        %432 = vset.pattern.permute.xlu0 0
        %433 = vperm.xlu0 %432, %v283
        %v434 = vpop.permute.xlu0 %433
        %437 = vset.pattern.permute.xlu0 0
        %438 = vperm.xlu0 %437, %v284
        %v439 = vpop.permute.xlu0 %438
        %442 = vset.pattern.permute.xlu0 0
        %443 = vperm.xlu0 %442, %v285
        %v444 = vpop.permute.xlu0 %443
        %vm446 = vcmask 64512
        %v448 = vsel %vm446, %v220, 0
        %v451 = vsel %vm446, %v221, 0
        %v454 = vsel %vm446, %v222, 0
        %v457 = vsel %vm446, %v223, 0
        %v460 = vsel %vm446, %v224, 0
        %v463 = vsel %vm446, %v225, 0
        %v466 = vsel %vm446, %v226, 0
        %v469 = vsel %vm446, %v227, 0
        %v472 = vsel %vm446, %v228, 0
        %v475 = vsel %vm446, %v229, 0
        %v478 = vsel %vm446, %v230, 0
        %v481 = vsel %vm446, %v231, 0
        %v484 = vsel %vm446, %v232, 0
        %v487 = vsel %vm446, %v233, 0
        %v490 = vsel %vm446, %v234, 0
        %v493 = vsel %vm446, %v235, 0
        %v496 = vsel %vm446, %v236, 0
        %v499 = vsel %vm446, %v237, 0
        %v502 = vsel %vm446, %v238, 0
        %v505 = vsel %vm446, %v239, 0
        %v508 = vsel %vm446, %v240, 0
        %v511 = vsel %vm446, %v241, 0
        %v514 = vsel %vm446, %v242, 0
        %v517 = vsel %vm446, %v243, 0
        %v520 = vsel %vm446, %v244, 0
        %v523 = vsel %vm446, %v245, 0
        %v526 = vsel %vm446, %v246, 0
        %v529 = vsel %vm446, %v247, 0
        %v532 = vsel %vm446, %v248, 0
        %v535 = vsel %vm446, %v249, 0
        %v538 = vsel %vm446, %v250, 0
        %v541 = vsel %vm446, %v251, 0
        %543 = vmatprep.subr.mxu0 0.0
        %544 = vmatpush1.msra.mxu0 0.0
        %545 = vmatprep.subr.mxu0 0.0
        %546 = vmatpush1.msra.mxu0 0.0
        %547 = vmatprep.subr.mxu0 0.0
        %548 = vmatpush1.msra.mxu0 0.0
        %549 = vmatprep.subr.mxu0 0.0
        %550 = vmatpush1.msra.mxu0 0.0
        %551 = vmatprep.subr.mxu0 0.0
        %552 = vmatpush1.msra.mxu0 0.0
        %553 = vmatprep.subr.mxu0 0.0
        %554 = vmatpush1.msra.mxu0 0.0
        %555 = vmatprep.subr.mxu0 0.0
        %556 = vmatpush1.msra.mxu0 0.0
        %557 = vmatprep.subr.mxu0 0.0
        %558 = vmatpush1.msra.mxu0 0.0
        %559 = vmatprep.subr.mxu0 0.0
        %560 = vmatpush1.msra.mxu0 0.0
        %561 = vmatprep.subr.mxu0 0.0
        %562 = vmatpush1.msra.mxu0 0.0
        %563 = vmatprep.subr.mxu0 0.0
        %564 = vmatpush1.msra.mxu0 0.0
        %565 = vmatprep.subr.mxu0 0.0
        %566 = vmatpush1.msra.mxu0 0.0
        %567 = vmatprep.subr.mxu0 0.0
        %568 = vmatpush1.msra.mxu0 0.0
        %569 = vmatprep.subr.mxu0 0.0
        %570 = vmatpush1.msra.mxu0 0.0
        %571 = vmatprep.subr.mxu0 0.0
        %572 = vmatpush1.msra.mxu0 0.0
        %573 = vmatprep.subr.mxu0 %v253
        %574 = vmatpush1.msra.mxu0 %v252
        %575 = vmatprep.subr.mxu0 0.0
        %576 = vmatpush2.msra.mxu0 0.0
        %577 = vmatprep.subr.mxu0 0.0
        %578 = vmatpush2.msra.mxu0 0.0
        %579 = vmatprep.subr.mxu0 0.0
        %580 = vmatpush2.msra.mxu0 0.0
        %581 = vmatprep.subr.mxu0 0.0
        %582 = vmatpush2.msra.mxu0 0.0
        %583 = vmatprep.subr.mxu0 0.0
        %584 = vmatpush2.msra.mxu0 0.0
        %585 = vmatprep.subr.mxu0 0.0
        %586 = vmatpush2.msra.mxu0 0.0
        %587 = vmatprep.subr.mxu0 0.0
        %588 = vmatpush2.msra.mxu0 0.0
        %589 = vmatprep.subr.mxu0 0.0
        %590 = vmatpush2.msra.mxu0 0.0
        %591 = vmatprep.subr.mxu0 0.0
        %592 = vmatpush2.msra.mxu0 0.0
        %593 = vmatprep.subr.mxu0 0.0
        %594 = vmatpush2.msra.mxu0 0.0
        %595 = vmatprep.subr.mxu0 0.0
        %596 = vmatpush2.msra.mxu0 0.0
        %597 = vmatprep.subr.mxu0 0.0
        %598 = vmatpush2.msra.mxu0 0.0
        %599 = vmatprep.subr.mxu0 0.0
        %600 = vmatpush2.msra.mxu0 0.0
        %601 = vmatprep.subr.mxu0 0.0
        %602 = vmatpush2.msra.mxu0 0.0
        %603 = vmatprep.subr.mxu0 0.0
        %604 = vmatpush2.msra.mxu0 0.0
        %605 = vmatprep.subr.mxu0 0.0
        %606 = vmatpush2.msra.mxu0 0.0
        %607 = vmatprep.mubr.f32.mxu0 0.0
        %608 = vmatmul.mubr.f32.gmra.mxu0 %v448
        %v609 = vpop.f32.mrf.mxu0
        %v610 = vadd.f32 %v289, %v609
        %v611 = vpop.f32.mrf.mxu0
        %v612 = vadd.f32 %v289, %v611
        %613 = vmatprep.mubr.f32.mxu0 0.0
        %614 = vmatmul.mubr.f32.gmra.mxu0 %v451
        %v615 = vpop.f32.mrf.mxu0
        %v616 = vadd.f32 %v294, %v615
        %v617 = vpop.f32.mrf.mxu0
        %v618 = vadd.f32 %v294, %v617
        %619 = vmatprep.mubr.f32.mxu0 0.0
        %620 = vmatmul.mubr.f32.gmra.mxu0 %v454
        %v621 = vpop.f32.mrf.mxu0
        %v622 = vadd.f32 %v299, %v621
        %v623 = vpop.f32.mrf.mxu0
        %v624 = vadd.f32 %v299, %v623
        %625 = vmatprep.mubr.f32.mxu0 0.0
        %626 = vmatmul.mubr.f32.gmra.mxu0 %v457
        %v627 = vpop.f32.mrf.mxu0
        %v628 = vadd.f32 %v304, %v627
        %v629 = vpop.f32.mrf.mxu0
        %v630 = vadd.f32 %v304, %v629
        %631 = vmatprep.mubr.f32.mxu0 0.0
        %632 = vmatmul.mubr.f32.gmra.mxu0 %v460
        %v633 = vpop.f32.mrf.mxu0
        %v634 = vadd.f32 %v309, %v633
        %v635 = vpop.f32.mrf.mxu0
        %v636 = vadd.f32 %v309, %v635
        %637 = vmatprep.mubr.f32.mxu0 0.0
        %638 = vmatmul.mubr.f32.gmra.mxu0 %v463
        %v639 = vpop.f32.mrf.mxu0
        %v640 = vadd.f32 %v314, %v639
        %v641 = vpop.f32.mrf.mxu0
        %v642 = vadd.f32 %v314, %v641
        %643 = vmatprep.mubr.f32.mxu0 0.0
        %644 = vmatmul.mubr.f32.gmra.mxu0 %v466
        %v645 = vpop.f32.mrf.mxu0
        %v646 = vadd.f32 %v319, %v645
        %v647 = vpop.f32.mrf.mxu0
        %v648 = vadd.f32 %v319, %v647
        %649 = vmatprep.mubr.f32.mxu0 0.0
        %650 = vmatmul.mubr.f32.gmra.mxu0 %v469
        %v651 = vpop.f32.mrf.mxu0
        %v652 = vadd.f32 %v324, %v651
        %v653 = vpop.f32.mrf.mxu0
        %v654 = vadd.f32 %v324, %v653
        %655 = vmatprep.mubr.f32.mxu0 0.0
        %656 = vmatmul.mubr.f32.gmra.mxu0 %v472
        %v657 = vpop.f32.mrf.mxu0
        %v658 = vadd.f32 %v329, %v657
        %v659 = vpop.f32.mrf.mxu0
        %v660 = vadd.f32 %v329, %v659
        %661 = vmatprep.mubr.f32.mxu0 0.0
        %662 = vmatmul.mubr.f32.gmra.mxu0 %v475
        %v663 = vpop.f32.mrf.mxu0
        %v664 = vadd.f32 %v334, %v663
        %v665 = vpop.f32.mrf.mxu0
        %v666 = vadd.f32 %v334, %v665
        %667 = vmatprep.mubr.f32.mxu0 0.0
        %668 = vmatmul.mubr.f32.gmra.mxu0 %v478
        %v669 = vpop.f32.mrf.mxu0
        %v670 = vadd.f32 %v339, %v669
        %v671 = vpop.f32.mrf.mxu0
        %v672 = vadd.f32 %v339, %v671
        %673 = vmatprep.mubr.f32.mxu0 0.0
        %674 = vmatmul.mubr.f32.gmra.mxu0 %v481
        %v675 = vpop.f32.mrf.mxu0
        %v676 = vadd.f32 %v344, %v675
        %v677 = vpop.f32.mrf.mxu0
        %v678 = vadd.f32 %v344, %v677
        %679 = vmatprep.mubr.f32.mxu0 0.0
        %680 = vmatmul.mubr.f32.gmra.mxu0 %v484
        %v681 = vpop.f32.mrf.mxu0
        %v682 = vadd.f32 %v349, %v681
        %v683 = vpop.f32.mrf.mxu0
        %v684 = vadd.f32 %v349, %v683
        %685 = vmatprep.mubr.f32.mxu0 0.0
        %686 = vmatmul.mubr.f32.gmra.mxu0 %v487
        %v687 = vpop.f32.mrf.mxu0
        %v688 = vadd.f32 %v354, %v687
        %v689 = vpop.f32.mrf.mxu0
        %v690 = vadd.f32 %v354, %v689
        %691 = vmatprep.mubr.f32.mxu0 0.0
        %692 = vmatmul.mubr.f32.gmra.mxu0 %v490
        %v693 = vpop.f32.mrf.mxu0
        %v694 = vadd.f32 %v359, %v693
        %v695 = vpop.f32.mrf.mxu0
        %v696 = vadd.f32 %v359, %v695
        %697 = vmatprep.mubr.f32.mxu0 0.0
        %698 = vmatmul.mubr.f32.gmra.mxu0 %v493
        %v699 = vpop.f32.mrf.mxu0
        %v700 = vadd.f32 %v364, %v699
        %v701 = vpop.f32.mrf.mxu0
        %v702 = vadd.f32 %v364, %v701
        %703 = vmatprep.mubr.f32.mxu0 0.0
        %704 = vmatmul.mubr.f32.gmra.mxu0 %v496
        %v705 = vpop.f32.mrf.mxu0
        %v706 = vadd.f32 %v369, %v705
        %v707 = vpop.f32.mrf.mxu0
        %v708 = vadd.f32 %v369, %v707
        %709 = vmatprep.mubr.f32.mxu0 0.0
        %710 = vmatmul.mubr.f32.gmra.mxu0 %v499
        %v711 = vpop.f32.mrf.mxu0
        %v712 = vadd.f32 %v374, %v711
        %v713 = vpop.f32.mrf.mxu0
        %v714 = vadd.f32 %v374, %v713
        %715 = vmatprep.mubr.f32.mxu0 0.0
        %716 = vmatmul.mubr.f32.gmra.mxu0 %v502
        %v717 = vpop.f32.mrf.mxu0
        %v718 = vadd.f32 %v379, %v717
        %v719 = vpop.f32.mrf.mxu0
        %v720 = vadd.f32 %v379, %v719
        %721 = vmatprep.mubr.f32.mxu0 0.0
        %722 = vmatmul.mubr.f32.gmra.mxu0 %v505
        %v723 = vpop.f32.mrf.mxu0
        %v724 = vadd.f32 %v384, %v723
        %v725 = vpop.f32.mrf.mxu0
        %v726 = vadd.f32 %v384, %v725
        %727 = vmatprep.mubr.f32.mxu0 0.0
        %728 = vmatmul.mubr.f32.gmra.mxu0 %v508
        %v729 = vpop.f32.mrf.mxu0
        %v730 = vadd.f32 %v389, %v729
        %v731 = vpop.f32.mrf.mxu0
        %v732 = vadd.f32 %v389, %v731
        %733 = vmatprep.mubr.f32.mxu0 0.0
        %734 = vmatmul.mubr.f32.gmra.mxu0 %v511
        %v735 = vpop.f32.mrf.mxu0
        %v736 = vadd.f32 %v394, %v735
        %v737 = vpop.f32.mrf.mxu0
        %v738 = vadd.f32 %v394, %v737
        %739 = vmatprep.mubr.f32.mxu0 0.0
        %740 = vmatmul.mubr.f32.gmra.mxu0 %v514
        %v741 = vpop.f32.mrf.mxu0
        %v742 = vadd.f32 %v399, %v741
        %v743 = vpop.f32.mrf.mxu0
        %v744 = vadd.f32 %v399, %v743
        %745 = vmatprep.mubr.f32.mxu0 0.0
        %746 = vmatmul.mubr.f32.gmra.mxu0 %v517
        %v747 = vpop.f32.mrf.mxu0
        %v748 = vadd.f32 %v404, %v747
        %v749 = vpop.f32.mrf.mxu0
        %v750 = vadd.f32 %v404, %v749
        %751 = vmatprep.mubr.f32.mxu0 0.0
        %752 = vmatmul.mubr.f32.gmra.mxu0 %v520
        %v753 = vpop.f32.mrf.mxu0
        %v754 = vadd.f32 %v409, %v753
        %v755 = vpop.f32.mrf.mxu0
        %v756 = vadd.f32 %v409, %v755
        %757 = vmatprep.mubr.f32.mxu0 0.0
        %758 = vmatmul.mubr.f32.gmra.mxu0 %v523
        %v759 = vpop.f32.mrf.mxu0
        %v760 = vadd.f32 %v414, %v759
        %v761 = vpop.f32.mrf.mxu0
        %v762 = vadd.f32 %v414, %v761
        %763 = vmatprep.mubr.f32.mxu0 0.0
        %764 = vmatmul.mubr.f32.gmra.mxu0 %v526
        %v765 = vpop.f32.mrf.mxu0
        %v766 = vadd.f32 %v419, %v765
        %v767 = vpop.f32.mrf.mxu0
        %v768 = vadd.f32 %v419, %v767
        %769 = vmatprep.mubr.f32.mxu0 0.0
        %770 = vmatmul.mubr.f32.gmra.mxu0 %v529
        %v771 = vpop.f32.mrf.mxu0
        %v772 = vadd.f32 %v424, %v771
        %v773 = vpop.f32.mrf.mxu0
        %v774 = vadd.f32 %v424, %v773
        %775 = vmatprep.mubr.f32.mxu0 0.0
        %776 = vmatmul.mubr.f32.gmra.mxu0 %v532
        %v777 = vpop.f32.mrf.mxu0
        %v778 = vadd.f32 %v429, %v777
        %v779 = vpop.f32.mrf.mxu0
        %v780 = vadd.f32 %v429, %v779
        %781 = vmatprep.mubr.f32.mxu0 0.0
        %782 = vmatmul.mubr.f32.gmra.mxu0 %v535
        %v783 = vpop.f32.mrf.mxu0
        %v784 = vadd.f32 %v434, %v783
        %v785 = vpop.f32.mrf.mxu0
        %v786 = vadd.f32 %v434, %v785
        %787 = vmatprep.mubr.f32.mxu0 0.0
        %788 = vmatmul.mubr.f32.gmra.mxu0 %v538
        %v789 = vpop.f32.mrf.mxu0
        %v790 = vadd.f32 %v439, %v789
        %v791 = vpop.f32.mrf.mxu0
        %v792 = vadd.f32 %v439, %v791
        %793 = vmatprep.mubr.f32.mxu0 0.0
        %794 = vmatmul.mubr.f32.gmra.mxu0 %v541
        %v795 = vpop.f32.mrf.mxu0
        %v796 = vadd.f32 %v444, %v795
        %v797 = vpop.f32.mrf.mxu0
        %v798 = vadd.f32 %v444, %v797
        %799 = vdwg.mxu0
        %800 = vst [vmem:[%s203] sm:$0xff] %v610
        %801 = vst [vmem:[%s203 + $0x8] sm:$0xff] %v612
        %802 = vst [vmem:[%s203 + $0x10] sm:$0xff] %v616
        %803 = vst [vmem:[%s203 + $0x18] sm:$0xff] %v618
        %804 = vst [vmem:[%s203 + $0x20] sm:$0xff] %v622
        %805 = vst [vmem:[%s203 + $0x28] sm:$0xff] %v624
        %806 = vst [vmem:[%s203 + $0x30] sm:$0xff] %v628
        %807 = vst [vmem:[%s203 + $0x38] sm:$0xff] %v630
        %808 = vst [vmem:[%s203 + $0x40] sm:$0xff] %v634
        %809 = vst [vmem:[%s203 + $0x48] sm:$0xff] %v636
        %810 = vst [vmem:[%s203 + $0x50] sm:$0xff] %v640
        %811 = vst [vmem:[%s203 + $0x58] sm:$0xff] %v642
        %812 = vst [vmem:[%s203 + $0x60] sm:$0xff] %v646
        %813 = vst [vmem:[%s203 + $0x68] sm:$0xff] %v648
        %814 = vst [vmem:[%s203 + $0x70] sm:$0xff] %v652
        %815 = vst [vmem:[%s203 + $0x78] sm:$0xff] %v654
        %816 = vst [vmem:[%s203 + $0x80] sm:$0xff] %v658
        %817 = vst [vmem:[%s203 + $0x88] sm:$0xff] %v660
        %818 = vst [vmem:[%s203 + $0x90] sm:$0xff] %v664
        %819 = vst [vmem:[%s203 + $0x98] sm:$0xff] %v666
        %820 = vst [vmem:[%s203 + $0xa0] sm:$0xff] %v670
        %821 = vst [vmem:[%s203 + $0xa8] sm:$0xff] %v672
        %822 = vst [vmem:[%s203 + $0xb0] sm:$0xff] %v676
        %823 = vst [vmem:[%s203 + $0xb8] sm:$0xff] %v678
        %824 = vst [vmem:[%s203 + $0xc0] sm:$0xff] %v682
        %825 = vst [vmem:[%s203 + $0xc8] sm:$0xff] %v684
        %826 = vst [vmem:[%s203 + $0xd0] sm:$0xff] %v688
        %827 = vst [vmem:[%s203 + $0xd8] sm:$0xff] %v690
        %828 = vst [vmem:[%s203 + $0xe0] sm:$0xff] %v694
        %829 = vst [vmem:[%s203 + $0xe8] sm:$0xff] %v696
        %830 = vst [vmem:[%s203 + $0xf0] sm:$0xff] %v700
        %831 = vst [vmem:[%s203 + $0xf8] sm:$0xff] %v702
        %832 = vst [vmem:[%s203 + $0x100] sm:$0xff] %v706
        %833 = vst [vmem:[%s203 + $0x108] sm:$0xff] %v708
        %834 = vst [vmem:[%s203 + $0x110] sm:$0xff] %v712
        %835 = vst [vmem:[%s203 + $0x118] sm:$0xff] %v714
        %836 = vst [vmem:[%s203 + $0x120] sm:$0xff] %v718
        %837 = vst [vmem:[%s203 + $0x128] sm:$0xff] %v720
        %838 = vst [vmem:[%s203 + $0x130] sm:$0xff] %v724
        %839 = vst [vmem:[%s203 + $0x138] sm:$0xff] %v726
        %840 = vst [vmem:[%s203 + $0x140] sm:$0xff] %v730
        %841 = vst [vmem:[%s203 + $0x148] sm:$0xff] %v732
        %842 = vst [vmem:[%s203 + $0x150] sm:$0xff] %v736
        %843 = vst [vmem:[%s203 + $0x158] sm:$0xff] %v738
        %844 = vst [vmem:[%s203 + $0x160] sm:$0xff] %v742
        %845 = vst [vmem:[%s203 + $0x168] sm:$0xff] %v744
        %846 = vst [vmem:[%s203 + $0x170] sm:$0xff] %v748
        %847 = vst [vmem:[%s203 + $0x178] sm:$0xff] %v750
        %848 = vst [vmem:[%s203 + $0x180] sm:$0xff] %v754
        %849 = vst [vmem:[%s203 + $0x188] sm:$0xff] %v756
        %850 = vst [vmem:[%s203 + $0x190] sm:$0xff] %v760
        %851 = vst [vmem:[%s203 + $0x198] sm:$0xff] %v762
        %852 = vst [vmem:[%s203 + $0x1a0] sm:$0xff] %v766
        %853 = vst [vmem:[%s203 + $0x1a8] sm:$0xff] %v768
        %854 = vst [vmem:[%s203 + $0x1b0] sm:$0xff] %v772
        %855 = vst [vmem:[%s203 + $0x1b8] sm:$0xff] %v774
        %856 = vst [vmem:[%s203 + $0x1c0] sm:$0xff] %v778
        %857 = vst [vmem:[%s203 + $0x1c8] sm:$0xff] %v780
        %858 = vst [vmem:[%s203 + $0x1d0] sm:$0xff] %v784
        %859 = vst [vmem:[%s203 + $0x1d8] sm:$0xff] %v786
        %860 = vst [vmem:[%s203 + $0x1e0] sm:$0xff] %v790
        %861 = vst [vmem:[%s203 + $0x1e8] sm:$0xff] %v792
        %862 = vst [vmem:[%s203 + $0x1f0] sm:$0xff] %v796
        %863 = vst [vmem:[%s203 + $0x1f8] sm:$0xff] %v798
        %s864 = sand.u32 %s114, 1
        %s865 = scalar_lea.sflag [#allocation3], %s864
        %s866 = sand.u32 %s114, 1
        %s867 = smul.addr %s866, 512
        %s868 = scalar_lea.vmem [#allocation2], %s867
        // Predicated region
        $region33: #{tpu_custom_call.1} parent=31 // pred_check
          %p869 = pneg %p124
        $region34: #{tpu_custom_call.1} parent=31 // pred_check_branch
          %871 = sbr.rel (%p869) target = $region36
        $region35: #{tpu_custom_call.1} parent=31 // pred_region
          %s872 = smul.u32 2, %s22
          %s874 = ssub.s32 8192, 8192
          %875 = vsyncadd %s865, %s874
          %s876 = smul.addr %s21, 64
          %s877 = sadd.s32 %s872, %s876
          %s878 = smul.addr %s877, 128
          %s879 = scalar_lea.hbm %s3, %s878
          %s880 = sshll.u32 %s868, 4
          %s881 = int_to_ptr.vmem [resolvable:$true] %s880
          %886 = dma.vmem_to_hbm [thread:$0]  %s881, 8192, %s879, %s865, 256, 256, 16
        $region36: #{tpu_custom_call.1} parent=31 // pred_fallthru
          _
      $region32: #{tpu_custom_call.1} parent=5 // pred_fallthru
        _
      %p887 = scmp.le.s32.totalorder 2, %s12
      // Predicated region
      $region37: #{tpu_custom_call.1} parent=5 // pred_check
        %p888 = pneg %p887
      $region38: #{tpu_custom_call.1} parent=5 // pred_check_branch
        %890 = sbr.rel (%p888) target = $region40
      $region39: #{tpu_custom_call.1} parent=5 // pred_region
        %s891 = ssub.s32 %s12, 2
        // Predicated region
        $region41: #{tpu_custom_call.1} parent=39 // pred_check
          %p892 = pneg %p130
        $region42: #{tpu_custom_call.1} parent=39 // pred_check_branch
          %894 = sbr.rel (%p892) target = $region44
        $region43: #{tpu_custom_call.1} parent=39 // pred_region
          %s895 = sand.u32 %s115, 1
          %s896 = scalar_lea.sflag [#allocation3], %s895
          %s897 = sand.u32 %s115, 1
          %s898 = smul.addr %s897, 512
          %s899 = scalar_lea.vmem [#allocation2], %s898
          %900 = dma.done %s896, 8192
        $region44: #{tpu_custom_call.1} parent=39 // pred_fallthru
          _
      $region40: #{tpu_custom_call.1} parent=5 // pred_fallthru
        _
    $region6: #{tpu_custom_call.1} parent=1 // loop_footer
      %s16 = sadd.s32 1, %s12
    $region7: #{tpu_custom_call.1} parent=1 // loop_footer_branch
      %11 = sbr.rel target = $region3
    $region8: #{tpu_custom_call.1} parent=1 // loop_exit
      _
    %901 = vsyncpa [#allocation3], 1
    %s902 = scalar_lea.sflag [#allocation3], 1
    %903 = vsyncpa %s902, 1

</llo_original>
